<compile_context>
chip_gen: v6e
topology: v6e:2x2x1
jax: 0.10.0
libtpu: 0.0.40
codegen_flags: <defaults>
</compile_context>

<pallas_src>
import jax
import jax.numpy as jnp
from jax.experimental import pallas as pl
from jax.experimental.pallas import tpu as pltpu

SEQ = 8
BATCH = 2
INPUT = 16
HIDDEN = 32
NUM_LAYERS = 2


def _lstm_kernel(x_ref, slab_ref, out_ref):
    TB, I = x_ref.shape
    H = slab_ref.shape[1] // 8
    B = out_ref.shape[0]
    T = TB // B
    H2, H4, H6, H8 = 2 * H, 4 * H, 6 * H, 8 * H
    assert slab_ref.shape[0] == I + H2 + 2

    # ---- unpack the single parameter slab (static slices of one VMEM ref) ----
    wih0w = slab_ref[0:I, :]                       # (I, 8H); odd gate blocks are 0
    w_big = slab_ref[I:I + H2, :]                  # (2H, 8H) block RHS
    brow = slab_ref[I + H2:I + H2 + 1, :]          # (1, 8H) interleaved [b0 | b1]
    fcrow = slab_ref[I + H2 + 1:I + H2 + 2, :]     # fc.weight lanes 0:H, fc.bias lane H
    fcw = fcrow[:, 0:H]                            # (1, H)
    fcb = fcrow[:, H:H + 1]                        # (1, 1)

    # ---- hoisted layer-0 input projection for all timesteps (one MXU push) ----
    # Even gate blocks get x_t @ wih0 + b0; odd blocks get just b1 (their
    # weight columns are zero), so all per-step bias adds are pre-folded.
    xproj = jnp.dot(x_ref[...], wih0w,
                    preferred_element_type=jnp.float32) + brow        # (T*B, 8H)

    def cell_pair(g8, c01):
        # One full-width sigmoid + one tanh over (B, 8H); gate blocks are
        # interleaved per layer, so each slice below is a contiguous 2H-lane
        # window and the update runs directly in the (B, 2H) [h0|h1] layout.
        sg = jax.nn.sigmoid(g8)
        tg = jnp.tanh(g8)
        c_new = sg[:, H2:H4] * c01 + sg[:, 0:H2] * tg[:, H4:H6]
        h_new = sg[:, H6:H8] * jnp.tanh(c_new)
        return h_new, c_new

    # ---- wavefront recurrence: one fused (B,2H)@(2H,8H) MXU push per step ----
    # carry: h01 = [h0_t | h1_{t-1}],  c01 = [c0_t | c1_{t-1}]   (B, 2H)
    #
    # t = 0: h0_{-1} = c0_{-1} = 0 -> skip the matmul; the layer-1 half must
    # stay exactly zero (PyTorch zero init), so mask it out of c01 (the h
    # half then zeroes itself via tanh(0)).
    lane = jax.lax.broadcasted_iota(jnp.int32, (B, H2), 1)
    g8 = xproj[0:B, :]
    sg = jax.nn.sigmoid(g8)
    tg = jnp.tanh(g8)
    c01 = jnp.where(lane < H, sg[:, 0:H2] * tg[:, H4:H6], 0.0)
    h01 = sg[:, H6:H8] * jnp.tanh(c01)

    # TODO(synk): nn.LSTM inter-layer dropout (p=0.1) is training-mode only;
    # this eval-mode forward omits it (identity), matching model.eval().
    for t in range(1, T):                          # static unroll, tiny trip count
        res = jnp.dot(h01, w_big, preferred_element_type=jnp.float32)   # (B, 8H)
        h01, c01 = cell_pair(xproj[t * B:(t + 1) * B, :] + res, c01)

    # ---- final layer-1 step (time T-1): same fused push, layer-0 half unused ----
    res = jnp.dot(h01, w_big, preferred_element_type=jnp.float32)
    h01, _ = cell_pair(res + jnp.broadcast_to(brow, (B, H8)), c01)
    h1_last = h01[:, H:H2]

    # ---- fc on last timestep + sigmoid (VPU mul + lane reduce, no N=1 MXU) ----
    logits = jnp.sum(h1_last * fcw, axis=-1, keepdims=True) + fcb
    out_ref[...] = jax.nn.sigmoid(logits)


def lstm_classification_forward(x, param_slab):
    T, B, I = x.shape
    x2d = x.reshape(T * B, I)          # lane-dense 2D operand for the hoisted matmul
    vmem = pl.BlockSpec(memory_space=pltpu.MemorySpace.VMEM)
    return pl.pallas_call(
        _lstm_kernel,
        out_shape=jax.ShapeDtypeStruct((B, 1), jnp.float32),
        in_specs=[vmem, vmem],
        out_specs=vmem,
    )(x2d, param_slab)


def make_raw_params(key, input_size, hidden_size):
    """Deterministic synthetic params, PyTorch nn.LSTM / nn.Linear shapes."""
    ks = jax.random.split(key, 10)

    def unif(k, shape, fan_in):
        bound = 1.0 / jnp.sqrt(fan_in)
        return jax.random.uniform(k, shape, jnp.float32, -bound, bound)

    H = hidden_size
    return (
        unif(ks[0], (4 * H, input_size), H),   # weight_ih_l0
        unif(ks[1], (4 * H, H), H),            # weight_hh_l0
        unif(ks[2], (4 * H,), H),              # bias_ih_l0
        unif(ks[3], (4 * H,), H),              # bias_hh_l0
        unif(ks[4], (4 * H, H), H),            # weight_ih_l1
        unif(ks[5], (4 * H, H), H),            # weight_hh_l1
        unif(ks[6], (4 * H,), H),              # bias_ih_l1
        unif(ks[7], (4 * H,), H),              # bias_hh_l1
        unif(ks[8], (1, H), H),                # fc.weight
        unif(ks[9], (1,), H),                  # fc.bias
    )


def pack_params(raw, input_size, hidden_size):
    """Pack all parameters into one (I + 2H + 2, 8H) f32 slab for the kernel.

    Column layout uses per-layer interleaved gate blocks
    [i0 i1 | f0 f1 | g0 g1 | o0 o1] so the kernel's fused block matmul emits
    gates directly in the [h0 | h1] carry layout.
    """
    (w_ih0, w_hh0, b_ih0, b_hh0,
     w_ih1, w_hh1, b_ih1, b_hh1, fc_w, fc_b) = raw
    I, H = input_size, hidden_size
    wih0T, whh0T = w_ih0.T, w_hh0.T
    wih1T, whh1T = w_ih1.T, w_hh1.T
    b0 = b_ih0 + b_hh0
    b1 = b_ih1 + b_hh1

    slab = jnp.zeros((I + 2 * H + 2, 8 * H), jnp.float32)
    for k in range(4):                                  # PyTorch gate order [i, f, g, o]
        src = slice(k * H, (k + 1) * H)                 # gate-k cols of the 4H layout
        d0 = slice(2 * k * H, (2 * k + 1) * H)          # layer-0 (even) gate block
        d1 = slice((2 * k + 1) * H, (2 * k + 2) * H)    # layer-1 (odd)  gate block
        slab = slab.at[0:I, d0].set(wih0T[:, src])              # hoisted x projection
        slab = slab.at[I:I + H, d0].set(whh0T[:, src])          # W_big: h0 rows
        slab = slab.at[I:I + H, d1].set(wih1T[:, src])
        slab = slab.at[I + H:I + 2 * H, d1].set(whh1T[:, src])  # W_big: h1 rows (d0 stays 0)
        slab = slab.at[I + 2 * H, d0].set(b0[src])
        slab = slab.at[I + 2 * H, d1].set(b1[src])
    slab = slab.at[I + 2 * H + 1, 0:H].set(fc_w[0])
    slab = slab.at[I + 2 * H + 1, H].set(fc_b[0])
    return slab


def reference_forward(x, raw):
    """Pure-JAX reference with identical semantics (for verification)."""
    (w_ih0, w_hh0, b_ih0, b_hh0,
     w_ih1, w_hh1, b_ih1, b_hh1, fc_w, fc_b) = raw
    T, B, _ = x.shape
    H = w_hh0.shape[1]

    def run_layer(seq_in, w_ih, w_hh, b):
        h = jnp.zeros((B, H), jnp.float32)
        c = jnp.zeros((B, H), jnp.float32)
        outs = []
        for t in range(T):
            gates = seq_in[t] @ w_ih.T + h @ w_hh.T + b
            i = jax.nn.sigmoid(gates[:, 0 * H:1 * H])
            f = jax.nn.sigmoid(gates[:, 1 * H:2 * H])
            g = jnp.tanh(gates[:, 2 * H:3 * H])
            o = jax.nn.sigmoid(gates[:, 3 * H:4 * H])
            c = f * c + i * g
            h = o * jnp.tanh(c)
            outs.append(h)
        return jnp.stack(outs)

    l0 = run_layer(x, w_ih0, w_hh0, b_ih0 + b_hh0)
    l1 = run_layer(l0, w_ih1, w_hh1, b_ih1 + b_hh1)
    return jax.nn.sigmoid(l1[-1] @ fc_w.T + fc_b)


if __name__ == "__main__":
    key = jax.random.PRNGKey(0)
    k_x, k_p = jax.random.split(key)
    x = jax.random.normal(k_x, (SEQ, BATCH, INPUT), jnp.float32)
    raw = make_raw_params(k_p, INPUT, HIDDEN)
    slab = pack_params(raw, INPUT, HIDDEN)

    out = lstm_classification_forward(x, slab)
    out = jax.block_until_ready(out)

    ref = reference_forward(x, raw)
    assert out.shape == (BATCH, 1)
    assert jnp.allclose(out, ref, atol=1e-5, rtol=1e-5), (out, ref)
    print("KERNEL_OK")
</pallas_src>

<mosaic_0001>
module attributes {stable_mosaic.version = 11 : i64} {
  func.func @_lstm_kernel(%arg0: memref<16x16xf32, #tpu.memory_space<vmem>>, %arg1: memref<82x256xf32, #tpu.memory_space<vmem>>, %arg2: memref<2x1xf32, #tpu.memory_space<vmem>>) attributes {dimension_semantics = [], scalar_prefetch = 0 : i64, scratch_operands = 0 : i64, tpu.core_type = #tpu.core_type<tc>} {
    %c0 = arith.constant 0 : index
    %c0_0 = arith.constant 0 : index
    %0 = vector.load %arg1[%c0, %c0_0] : memref<82x256xf32, #tpu.memory_space<vmem>>, vector<16x256xf32>
    %c16 = arith.constant 16 : index
    %c0_1 = arith.constant 0 : index
    %1 = vector.load %arg1[%c16, %c0_1] : memref<82x256xf32, #tpu.memory_space<vmem>>, vector<64x256xf32>
    %c80 = arith.constant 80 : index
    %c0_2 = arith.constant 0 : index
    %2 = vector.load %arg1[%c80, %c0_2] : memref<82x256xf32, #tpu.memory_space<vmem>>, vector<1x256xf32>
    %c81 = arith.constant 81 : index
    %c0_3 = arith.constant 0 : index
    %3 = vector.load %arg1[%c81, %c0_3] : memref<82x256xf32, #tpu.memory_space<vmem>>, vector<1x256xf32>
    %4 = vector.extract_strided_slice %3 {offsets = [0, 0], sizes = [1, 32], strides = [1, 1]} : vector<1x256xf32> to vector<1x32xf32>
    %5 = vector.extract_strided_slice %3 {offsets = [0, 32], sizes = [1, 1], strides = [1, 1]} : vector<1x256xf32> to vector<1x1xf32>
    %c0_4 = arith.constant 0 : index
    %c0_5 = arith.constant 0 : index
    %6 = vector.load %arg0[%c0_4, %c0_5] : memref<16x16xf32, #tpu.memory_space<vmem>>, vector<16x16xf32>
    %cst = arith.constant dense<0.000000e+00> : vector<16x256xf32>
    %7 = tpu.matmul %6, %0, %cst {dimension_numbers = #tpu.dot_dimension_numbers<[1], [0], [0], [1], [0, 0, 1, 1], [], []>} : vector<16x16xf32>, vector<16x256xf32>, vector<16x256xf32> -> vector<16x256xf32>
    %8 = vector.broadcast %2 : vector<1x256xf32> to vector<16x256xf32>
    %9 = arith.addf %7, %8 : vector<16x256xf32>
    %10 = tpu.iota {dimensions = array<i32: 1>} : vector<2x64xi32>
    %11 = vector.extract_strided_slice %9 {offsets = [0, 0], sizes = [2, 256], strides = [1, 1]} : vector<16x256xf32> to vector<2x256xf32>
    %12 = arith.negf %11 : vector<2x256xf32>
    %13 = math.exp %12 : vector<2x256xf32>
    %cst_6 = arith.constant 1.000000e+00 : f32
    %14 = vector.broadcast %cst_6 : f32 to vector<2x256xf32>
    %15 = arith.addf %14, %13 : vector<2x256xf32>
    %16 = arith.divf %14, %15 : vector<2x256xf32>
    %17 = math.tanh %11 : vector<2x256xf32>
    %c32_i32 = arith.constant 32 : i32
    %18 = vector.broadcast %c32_i32 : i32 to vector<2x64xi32>
    %19 = arith.cmpi slt, %10, %18 : vector<2x64xi32>
    %20 = vector.extract_strided_slice %16 {offsets = [0, 0], sizes = [2, 64], strides = [1, 1]} : vector<2x256xf32> to vector<2x64xf32>
    %21 = vector.extract_strided_slice %17 {offsets = [0, 128], sizes = [2, 64], strides = [1, 1]} : vector<2x256xf32> to vector<2x64xf32>
    %22 = arith.mulf %20, %21 : vector<2x64xf32>
    %cst_7 = arith.constant 0.000000e+00 : f32
    %23 = vector.broadcast %cst_7 : f32 to vector<2x64xf32>
    %24 = arith.select %19, %22, %23 : vector<2x64xi1>, vector<2x64xf32>
    %25 = vector.extract_strided_slice %16 {offsets = [0, 192], sizes = [2, 64], strides = [1, 1]} : vector<2x256xf32> to vector<2x64xf32>
    %26 = math.tanh %24 : vector<2x64xf32>
    %27 = arith.mulf %25, %26 : vector<2x64xf32>
    %cst_8 = arith.constant dense<0.000000e+00> : vector<2x256xf32>
    %28 = tpu.matmul %27, %1, %cst_8 {dimension_numbers = #tpu.dot_dimension_numbers<[1], [0], [0], [1], [0, 0, 1, 1], [], []>} : vector<2x64xf32>, vector<64x256xf32>, vector<2x256xf32> -> vector<2x256xf32>
    %29 = vector.extract_strided_slice %9 {offsets = [2, 0], sizes = [2, 256], strides = [1, 1]} : vector<16x256xf32> to vector<2x256xf32>
    %30 = arith.addf %29, %28 : vector<2x256xf32>
    %31 = arith.negf %30 : vector<2x256xf32>
    %32 = math.exp %31 : vector<2x256xf32>
    %cst_9 = arith.constant 1.000000e+00 : f32
    %33 = vector.broadcast %cst_9 : f32 to vector<2x256xf32>
    %34 = arith.addf %33, %32 : vector<2x256xf32>
    %35 = arith.divf %33, %34 : vector<2x256xf32>
    %36 = math.tanh %30 : vector<2x256xf32>
    %37 = vector.extract_strided_slice %35 {offsets = [0, 64], sizes = [2, 64], strides = [1, 1]} : vector<2x256xf32> to vector<2x64xf32>
    %38 = arith.mulf %37, %24 : vector<2x64xf32>
    %39 = vector.extract_strided_slice %35 {offsets = [0, 0], sizes = [2, 64], strides = [1, 1]} : vector<2x256xf32> to vector<2x64xf32>
    %40 = vector.extract_strided_slice %36 {offsets = [0, 128], sizes = [2, 64], strides = [1, 1]} : vector<2x256xf32> to vector<2x64xf32>
    %41 = arith.mulf %39, %40 : vector<2x64xf32>
    %42 = arith.addf %38, %41 : vector<2x64xf32>
    %43 = vector.extract_strided_slice %35 {offsets = [0, 192], sizes = [2, 64], strides = [1, 1]} : vector<2x256xf32> to vector<2x64xf32>
    %44 = math.tanh %42 : vector<2x64xf32>
    %45 = arith.mulf %43, %44 : vector<2x64xf32>
    %cst_10 = arith.constant dense<0.000000e+00> : vector<2x256xf32>
    %46 = tpu.matmul %45, %1, %cst_10 {dimension_numbers = #tpu.dot_dimension_numbers<[1], [0], [0], [1], [0, 0, 1, 1], [], []>} : vector<2x64xf32>, vector<64x256xf32>, vector<2x256xf32> -> vector<2x256xf32>
    %47 = vector.extract_strided_slice %9 {offsets = [4, 0], sizes = [2, 256], strides = [1, 1]} : vector<16x256xf32> to vector<2x256xf32>
    %48 = arith.addf %47, %46 : vector<2x256xf32>
    %49 = arith.negf %48 : vector<2x256xf32>
    %50 = math.exp %49 : vector<2x256xf32>
    %cst_11 = arith.constant 1.000000e+00 : f32
    %51 = vector.broadcast %cst_11 : f32 to vector<2x256xf32>
    %52 = arith.addf %51, %50 : vector<2x256xf32>
    %53 = arith.divf %51, %52 : vector<2x256xf32>
    %54 = math.tanh %48 : vector<2x256xf32>
    %55 = vector.extract_strided_slice %53 {offsets = [0, 64], sizes = [2, 64], strides = [1, 1]} : vector<2x256xf32> to vector<2x64xf32>
    %56 = arith.mulf %55, %42 : vector<2x64xf32>
    %57 = vector.extract_strided_slice %53 {offsets = [0, 0], sizes = [2, 64], strides = [1, 1]} : vector<2x256xf32> to vector<2x64xf32>
    %58 = vector.extract_strided_slice %54 {offsets = [0, 128], sizes = [2, 64], strides = [1, 1]} : vector<2x256xf32> to vector<2x64xf32>
    %59 = arith.mulf %57, %58 : vector<2x64xf32>
    %60 = arith.addf %56, %59 : vector<2x64xf32>
    %61 = vector.extract_strided_slice %53 {offsets = [0, 192], sizes = [2, 64], strides = [1, 1]} : vector<2x256xf32> to vector<2x64xf32>
    %62 = math.tanh %60 : vector<2x64xf32>
    %63 = arith.mulf %61, %62 : vector<2x64xf32>
    %cst_12 = arith.constant dense<0.000000e+00> : vector<2x256xf32>
    %64 = tpu.matmul %63, %1, %cst_12 {dimension_numbers = #tpu.dot_dimension_numbers<[1], [0], [0], [1], [0, 0, 1, 1], [], []>} : vector<2x64xf32>, vector<64x256xf32>, vector<2x256xf32> -> vector<2x256xf32>
    %65 = vector.extract_strided_slice %9 {offsets = [6, 0], sizes = [2, 256], strides = [1, 1]} : vector<16x256xf32> to vector<2x256xf32>
    %66 = arith.addf %65, %64 : vector<2x256xf32>
    %67 = arith.negf %66 : vector<2x256xf32>
    %68 = math.exp %67 : vector<2x256xf32>
    %cst_13 = arith.constant 1.000000e+00 : f32
    %69 = vector.broadcast %cst_13 : f32 to vector<2x256xf32>
    %70 = arith.addf %69, %68 : vector<2x256xf32>
    %71 = arith.divf %69, %70 : vector<2x256xf32>
    %72 = math.tanh %66 : vector<2x256xf32>
    %73 = vector.extract_strided_slice %71 {offsets = [0, 64], sizes = [2, 64], strides = [1, 1]} : vector<2x256xf32> to vector<2x64xf32>
    %74 = arith.mulf %73, %60 : vector<2x64xf32>
    %75 = vector.extract_strided_slice %71 {offsets = [0, 0], sizes = [2, 64], strides = [1, 1]} : vector<2x256xf32> to vector<2x64xf32>
    %76 = vector.extract_strided_slice %72 {offsets = [0, 128], sizes = [2, 64], strides = [1, 1]} : vector<2x256xf32> to vector<2x64xf32>
    %77 = arith.mulf %75, %76 : vector<2x64xf32>
    %78 = arith.addf %74, %77 : vector<2x64xf32>
    %79 = vector.extract_strided_slice %71 {offsets = [0, 192], sizes = [2, 64], strides = [1, 1]} : vector<2x256xf32> to vector<2x64xf32>
    %80 = math.tanh %78 : vector<2x64xf32>
    %81 = arith.mulf %79, %80 : vector<2x64xf32>
    %cst_14 = arith.constant dense<0.000000e+00> : vector<2x256xf32>
    %82 = tpu.matmul %81, %1, %cst_14 {dimension_numbers = #tpu.dot_dimension_numbers<[1], [0], [0], [1], [0, 0, 1, 1], [], []>} : vector<2x64xf32>, vector<64x256xf32>, vector<2x256xf32> -> vector<2x256xf32>
    %83 = vector.extract_strided_slice %9 {offsets = [8, 0], sizes = [2, 256], strides = [1, 1]} : vector<16x256xf32> to vector<2x256xf32>
    %84 = arith.addf %83, %82 : vector<2x256xf32>
    %85 = arith.negf %84 : vector<2x256xf32>
    %86 = math.exp %85 : vector<2x256xf32>
    %cst_15 = arith.constant 1.000000e+00 : f32
    %87 = vector.broadcast %cst_15 : f32 to vector<2x256xf32>
    %88 = arith.addf %87, %86 : vector<2x256xf32>
    %89 = arith.divf %87, %88 : vector<2x256xf32>
    %90 = math.tanh %84 : vector<2x256xf32>
    %91 = vector.extract_strided_slice %89 {offsets = [0, 64], sizes = [2, 64], strides = [1, 1]} : vector<2x256xf32> to vector<2x64xf32>
    %92 = arith.mulf %91, %78 : vector<2x64xf32>
    %93 = vector.extract_strided_slice %89 {offsets = [0, 0], sizes = [2, 64], strides = [1, 1]} : vector<2x256xf32> to vector<2x64xf32>
    %94 = vector.extract_strided_slice %90 {offsets = [0, 128], sizes = [2, 64], strides = [1, 1]} : vector<2x256xf32> to vector<2x64xf32>
    %95 = arith.mulf %93, %94 : vector<2x64xf32>
    %96 = arith.addf %92, %95 : vector<2x64xf32>
    %97 = vector.extract_strided_slice %89 {offsets = [0, 192], sizes = [2, 64], strides = [1, 1]} : vector<2x256xf32> to vector<2x64xf32>
    %98 = math.tanh %96 : vector<2x64xf32>
    %99 = arith.mulf %97, %98 : vector<2x64xf32>
    %cst_16 = arith.constant dense<0.000000e+00> : vector<2x256xf32>
    %100 = tpu.matmul %99, %1, %cst_16 {dimension_numbers = #tpu.dot_dimension_numbers<[1], [0], [0], [1], [0, 0, 1, 1], [], []>} : vector<2x64xf32>, vector<64x256xf32>, vector<2x256xf32> -> vector<2x256xf32>
    %101 = vector.extract_strided_slice %9 {offsets = [10, 0], sizes = [2, 256], strides = [1, 1]} : vector<16x256xf32> to vector<2x256xf32>
    %102 = arith.addf %101, %100 : vector<2x256xf32>
    %103 = arith.negf %102 : vector<2x256xf32>
    %104 = math.exp %103 : vector<2x256xf32>
    %cst_17 = arith.constant 1.000000e+00 : f32
    %105 = vector.broadcast %cst_17 : f32 to vector<2x256xf32>
    %106 = arith.addf %105, %104 : vector<2x256xf32>
    %107 = arith.divf %105, %106 : vector<2x256xf32>
    %108 = math.tanh %102 : vector<2x256xf32>
    %109 = vector.extract_strided_slice %107 {offsets = [0, 64], sizes = [2, 64], strides = [1, 1]} : vector<2x256xf32> to vector<2x64xf32>
    %110 = arith.mulf %109, %96 : vector<2x64xf32>
    %111 = vector.extract_strided_slice %107 {offsets = [0, 0], sizes = [2, 64], strides = [1, 1]} : vector<2x256xf32> to vector<2x64xf32>
    %112 = vector.extract_strided_slice %108 {offsets = [0, 128], sizes = [2, 64], strides = [1, 1]} : vector<2x256xf32> to vector<2x64xf32>
    %113 = arith.mulf %111, %112 : vector<2x64xf32>
    %114 = arith.addf %110, %113 : vector<2x64xf32>
    %115 = vector.extract_strided_slice %107 {offsets = [0, 192], sizes = [2, 64], strides = [1, 1]} : vector<2x256xf32> to vector<2x64xf32>
    %116 = math.tanh %114 : vector<2x64xf32>
    %117 = arith.mulf %115, %116 : vector<2x64xf32>
    %cst_18 = arith.constant dense<0.000000e+00> : vector<2x256xf32>
    %118 = tpu.matmul %117, %1, %cst_18 {dimension_numbers = #tpu.dot_dimension_numbers<[1], [0], [0], [1], [0, 0, 1, 1], [], []>} : vector<2x64xf32>, vector<64x256xf32>, vector<2x256xf32> -> vector<2x256xf32>
    %119 = vector.extract_strided_slice %9 {offsets = [12, 0], sizes = [2, 256], strides = [1, 1]} : vector<16x256xf32> to vector<2x256xf32>
    %120 = arith.addf %119, %118 : vector<2x256xf32>
    %121 = arith.negf %120 : vector<2x256xf32>
    %122 = math.exp %121 : vector<2x256xf32>
    %cst_19 = arith.constant 1.000000e+00 : f32
    %123 = vector.broadcast %cst_19 : f32 to vector<2x256xf32>
    %124 = arith.addf %123, %122 : vector<2x256xf32>
    %125 = arith.divf %123, %124 : vector<2x256xf32>
    %126 = math.tanh %120 : vector<2x256xf32>
    %127 = vector.extract_strided_slice %125 {offsets = [0, 64], sizes = [2, 64], strides = [1, 1]} : vector<2x256xf32> to vector<2x64xf32>
    %128 = arith.mulf %127, %114 : vector<2x64xf32>
    %129 = vector.extract_strided_slice %125 {offsets = [0, 0], sizes = [2, 64], strides = [1, 1]} : vector<2x256xf32> to vector<2x64xf32>
    %130 = vector.extract_strided_slice %126 {offsets = [0, 128], sizes = [2, 64], strides = [1, 1]} : vector<2x256xf32> to vector<2x64xf32>
    %131 = arith.mulf %129, %130 : vector<2x64xf32>
    %132 = arith.addf %128, %131 : vector<2x64xf32>
    %133 = vector.extract_strided_slice %125 {offsets = [0, 192], sizes = [2, 64], strides = [1, 1]} : vector<2x256xf32> to vector<2x64xf32>
    %134 = math.tanh %132 : vector<2x64xf32>
    %135 = arith.mulf %133, %134 : vector<2x64xf32>
    %cst_20 = arith.constant dense<0.000000e+00> : vector<2x256xf32>
    %136 = tpu.matmul %135, %1, %cst_20 {dimension_numbers = #tpu.dot_dimension_numbers<[1], [0], [0], [1], [0, 0, 1, 1], [], []>} : vector<2x64xf32>, vector<64x256xf32>, vector<2x256xf32> -> vector<2x256xf32>
    %137 = vector.extract_strided_slice %9 {offsets = [14, 0], sizes = [2, 256], strides = [1, 1]} : vector<16x256xf32> to vector<2x256xf32>
    %138 = arith.addf %137, %136 : vector<2x256xf32>
    %139 = arith.negf %138 : vector<2x256xf32>
    %140 = math.exp %139 : vector<2x256xf32>
    %cst_21 = arith.constant 1.000000e+00 : f32
    %141 = vector.broadcast %cst_21 : f32 to vector<2x256xf32>
    %142 = arith.addf %141, %140 : vector<2x256xf32>
    %143 = arith.divf %141, %142 : vector<2x256xf32>
    %144 = math.tanh %138 : vector<2x256xf32>
    %145 = vector.extract_strided_slice %143 {offsets = [0, 64], sizes = [2, 64], strides = [1, 1]} : vector<2x256xf32> to vector<2x64xf32>
    %146 = arith.mulf %145, %132 : vector<2x64xf32>
    %147 = vector.extract_strided_slice %143 {offsets = [0, 0], sizes = [2, 64], strides = [1, 1]} : vector<2x256xf32> to vector<2x64xf32>
    %148 = vector.extract_strided_slice %144 {offsets = [0, 128], sizes = [2, 64], strides = [1, 1]} : vector<2x256xf32> to vector<2x64xf32>
    %149 = arith.mulf %147, %148 : vector<2x64xf32>
    %150 = arith.addf %146, %149 : vector<2x64xf32>
    %151 = vector.extract_strided_slice %143 {offsets = [0, 192], sizes = [2, 64], strides = [1, 1]} : vector<2x256xf32> to vector<2x64xf32>
    %152 = math.tanh %150 : vector<2x64xf32>
    %153 = arith.mulf %151, %152 : vector<2x64xf32>
    %cst_22 = arith.constant dense<0.000000e+00> : vector<2x256xf32>
    %154 = tpu.matmul %153, %1, %cst_22 {dimension_numbers = #tpu.dot_dimension_numbers<[1], [0], [0], [1], [0, 0, 1, 1], [], []>} : vector<2x64xf32>, vector<64x256xf32>, vector<2x256xf32> -> vector<2x256xf32>
    %155 = vector.shape_cast %2 : vector<1x256xf32> to vector<1x256xf32>
    %156 = vector.broadcast %155 : vector<1x256xf32> to vector<2x256xf32>
    %157 = arith.addf %154, %156 : vector<2x256xf32>
    %158 = arith.negf %157 : vector<2x256xf32>
    %159 = math.exp %158 : vector<2x256xf32>
    %cst_23 = arith.constant 1.000000e+00 : f32
    %160 = vector.broadcast %cst_23 : f32 to vector<2x256xf32>
    %161 = arith.addf %160, %159 : vector<2x256xf32>
    %162 = arith.divf %160, %161 : vector<2x256xf32>
    %163 = math.tanh %157 : vector<2x256xf32>
    %164 = vector.extract_strided_slice %162 {offsets = [0, 64], sizes = [2, 64], strides = [1, 1]} : vector<2x256xf32> to vector<2x64xf32>
    %165 = arith.mulf %164, %150 : vector<2x64xf32>
    %166 = vector.extract_strided_slice %162 {offsets = [0, 0], sizes = [2, 64], strides = [1, 1]} : vector<2x256xf32> to vector<2x64xf32>
    %167 = vector.extract_strided_slice %163 {offsets = [0, 128], sizes = [2, 64], strides = [1, 1]} : vector<2x256xf32> to vector<2x64xf32>
    %168 = arith.mulf %166, %167 : vector<2x64xf32>
    %169 = arith.addf %165, %168 : vector<2x64xf32>
    %170 = vector.extract_strided_slice %162 {offsets = [0, 192], sizes = [2, 64], strides = [1, 1]} : vector<2x256xf32> to vector<2x64xf32>
    %171 = math.tanh %169 : vector<2x64xf32>
    %172 = arith.mulf %170, %171 : vector<2x64xf32>
    %173 = vector.extract_strided_slice %172 {offsets = [0, 32], sizes = [2, 32], strides = [1, 1]} : vector<2x64xf32> to vector<2x32xf32>
    %174 = vector.broadcast %4 : vector<1x32xf32> to vector<2x32xf32>
    %175 = arith.mulf %173, %174 : vector<2x32xf32>
    %cst_24 = arith.constant dense<0.000000e+00> : vector<2xf32>
    %176 = vector.multi_reduction <add>, %175, %cst_24 [1] : vector<2x32xf32> to vector<2xf32>
    %177 = vector.shape_cast %176 : vector<2xf32> to vector<2x1xf32>
    %178 = vector.broadcast %5 : vector<1x1xf32> to vector<2x1xf32>
    %179 = arith.addf %177, %178 : vector<2x1xf32>
    %180 = arith.negf %179 : vector<2x1xf32>
    %181 = math.exp %180 : vector<2x1xf32>
    %cst_25 = arith.constant 1.000000e+00 : f32
    %182 = vector.broadcast %cst_25 : f32 to vector<2x1xf32>
    %183 = arith.addf %182, %181 : vector<2x1xf32>
    %184 = arith.divf %182, %183 : vector<2x1xf32>
    %c0_26 = arith.constant 0 : index
    %c0_27 = arith.constant 0 : index
    %185 = vector.load %arg2[%c0_26, %c0_27] : memref<2x1xf32, #tpu.memory_space<vmem>>, vector<2x1xf32>
    tpu.vector_store %arg2[%c0_26, %c0_27], %184 {strides = array<i32>} : memref<2x1xf32, #tpu.memory_space<vmem>>, vector<2x1xf32>,
    return
  }
}

</mosaic_0001>

<llo_original>
// kernel: tpu_custom_call.1
$region0: #{tpu_custom_call.1}
  #allocation0 [shape = 'u32[]', space=smem, size = 0x4, offset = 0x4, fixed_abs, tag = 'smem constant byte address 0x4 - core index']
  #allocation1 [shape = 'u32[144,128]{1,0:T(1,128)}', space=vmem, size = 0x12000, scoped, tag = 'internal scratch']
  %s0 = inlined_call_operand.hbm [shape: f32[16,16], index: 0, kind: input, shape index: {}]
  %s1 = inlined_call_operand.hbm [shape: f32[82,256], index: 1, kind: input, shape index: {}]
  %s2 = inlined_call_operand.vmem [shape: f32[2,1], index: 2, kind: output, shape index: {}]
  %s3 = sld [smem:[#allocation0]]
  $region26: #{tpu_custom_call.1} parent=0
    _
  %s5 = ssub.s32 1, %s3
  %s6 = scalar_select 0, %s5, %s3
  $region1: #{tpu_custom_call.1} parent=0
    #allocation2 [shape = 'u8[8192]{0}', space=vmem, size = 0x2000, scoped, tag = 'input window, operand 0, single buffered']
    #allocation3 [shape = 's32[1]{0}', space=sflag, size = 0x4, scoped, tag = 'scoped memory for tpu_custom_call.1']
    #allocation4 [shape = 'u8[90112]{0}', space=vmem, size = 0x16000, scoped, tag = 'input window, operand 1, single buffered']
    #allocation5 [shape = 's32[1]{0}', space=sflag, size = 0x4, scoped, tag = 'scoped memory for tpu_custom_call.1']
    %7 = vsyncpa [#allocation3], 0
    %8 = vsyncpa [#allocation5], 0
    // Predicated region
    $region2: #{tpu_custom_call.1} parent=1 // pred_check
      _
    $region3: #{tpu_custom_call.1} parent=1 // pred_check_branch
      %10 = sbr.rel (0) target = $region5
    $region4: #{tpu_custom_call.1} parent=1 // pred_region
      %s12 = ssub.s32 256, 256
      %13 = vsyncadd [#allocation3], %s12
      %s14 = sshll.u32 [#allocation2], 4
      %s15 = int_to_ptr.vmem [resolvable:$true] %s14
      %20 = dma.hbm_to_vmem [thread:$0]  %s0, 256, %s15, [#allocation3], 128, 128, 8
    $region5: #{tpu_custom_call.1} parent=1 // pred_fallthru
      _
    // Predicated region
    $region6: #{tpu_custom_call.1} parent=1 // pred_check
      _
    $region7: #{tpu_custom_call.1} parent=1 // pred_check_branch
      %22 = sbr.rel (0) target = $region9
    $region8: #{tpu_custom_call.1} parent=1 // pred_region
      %s24 = ssub.s32 2816, 2816
      %25 = vsyncadd [#allocation5], %s24
      %s26 = sshll.u32 [#allocation4], 4
      %s27 = int_to_ptr.vmem [resolvable:$true] %s26
      %32 = dma.hbm_to_vmem [thread:$0]  %s1, 2816, %s27, [#allocation5], 256, 256, 16
    $region9: #{tpu_custom_call.1} parent=1 // pred_fallthru
      _
    // Predicated region
    $region10: #{tpu_custom_call.1} parent=1 // pred_check
      _
    $region11: #{tpu_custom_call.1} parent=1 // pred_check_branch
      %34 = sbr.rel (0) target = $region13
    $region12: #{tpu_custom_call.1} parent=1 // pred_region
      %35 = dma.done [#allocation3], 256
    $region13: #{tpu_custom_call.1} parent=1 // pred_fallthru
      _
    // Predicated region
    $region14: #{tpu_custom_call.1} parent=1 // pred_check
      _
    $region15: #{tpu_custom_call.1} parent=1 // pred_check_branch
      %37 = sbr.rel (0) target = $region17
    $region16: #{tpu_custom_call.1} parent=1 // pred_region
      %38 = dma.done [#allocation5], 2816
    $region17: #{tpu_custom_call.1} parent=1 // pred_fallthru
      _
    %v39 = vld [vmem:[#allocation4] sm:$0xff]
    %v40 = vld [vmem:[#allocation4 + $0x8] sm:$0xff]
    %v41 = vld [vmem:[#allocation4 + $0x10] sm:$0xff]
    %v42 = vld [vmem:[#allocation4 + $0x18] sm:$0xff]
    %v43 = vld [vmem:[#allocation4 + $0x20] sm:$0xff]
    %v44 = vld [vmem:[#allocation4 + $0x28] sm:$0xff]
    %v45 = vld [vmem:[#allocation4 + $0x30] sm:$0xff]
    %v46 = vld [vmem:[#allocation4 + $0x38] sm:$0xff]
    %v47 = vld [vmem:[#allocation4 + $0x40] sm:$0xff]
    %v48 = vld [vmem:[#allocation4 + $0x48] sm:$0xff]
    %v49 = vld [vmem:[#allocation4 + $0x50] sm:$0xff]
    %v50 = vld [vmem:[#allocation4 + $0x58] sm:$0xff]
    %v51 = vld [vmem:[#allocation4 + $0x60] sm:$0xff]
    %v52 = vld [vmem:[#allocation4 + $0x68] sm:$0xff]
    %v53 = vld [vmem:[#allocation4 + $0x70] sm:$0xff]
    %v54 = vld [vmem:[#allocation4 + $0x78] sm:$0xff]
    %v55 = vld [vmem:[#allocation4 + $0x80] sm:$0xff]
    %v56 = vld [vmem:[#allocation4 + $0x88] sm:$0xff]
    %v57 = vld [vmem:[#allocation4 + $0x90] sm:$0xff]
    %v58 = vld [vmem:[#allocation4 + $0x98] sm:$0xff]
    %s59 = scalar_lea.vmem [#allocation4], 160
    %v60 = vld [vmem:[%s59] ss:$8 sm:$0x3]
    %s61 = scalar_lea.vmem [#allocation4], 161
    %v62 = vld [vmem:[%s61] ss:$8 sm:$0x3]
    %v63 = vld [vmem:[#allocation2] sm:$0xff]
    %v64 = vld [vmem:[#allocation2 + $0x8] sm:$0xff]
    %v66 = vlaneseq
    %v67 = vshrl.u32 %v66, 7
    %v68 = vsub.s32 0, %v67
    %v69 = vrot.slane %v60, %v68
    %v70 = vlaneseq
    %v71 = vshrl.u32 %v70, 7
    %v72 = vsub.s32 1, %v71
    %v73 = vrot.slane %v60, %v72
    %vm76 = vcmask 130048
    %v78 = vsel %vm76, %v63, 0
    %v81 = vsel %vm76, %v64, 0
    %83 = vmatprep.subr.mxu0 0.0
    %84 = vmatpush1.msra.mxu0 0.0
    %85 = vmatprep.subr.mxu0 0.0
    %86 = vmatpush1.msra.mxu0 0.0
    %87 = vmatprep.subr.mxu0 0.0
    %88 = vmatpush1.msra.mxu0 0.0
    %89 = vmatprep.subr.mxu0 0.0
    %90 = vmatpush1.msra.mxu0 0.0
    %91 = vmatprep.subr.mxu0 0.0
    %92 = vmatpush1.msra.mxu0 0.0
    %93 = vmatprep.subr.mxu0 0.0
    %94 = vmatpush1.msra.mxu0 0.0
    %95 = vmatprep.subr.mxu0 0.0
    %96 = vmatpush1.msra.mxu0 0.0
    %97 = vmatprep.subr.mxu0 0.0
    %98 = vmatpush1.msra.mxu0 0.0
    %99 = vmatprep.subr.mxu0 0.0
    %100 = vmatpush1.msra.mxu0 0.0
    %101 = vmatprep.subr.mxu0 0.0
    %102 = vmatpush1.msra.mxu0 0.0
    %103 = vmatprep.subr.mxu0 0.0
    %104 = vmatpush1.msra.mxu0 0.0
    %105 = vmatprep.subr.mxu0 0.0
    %106 = vmatpush1.msra.mxu0 0.0
    %107 = vmatprep.subr.mxu0 0.0
    %108 = vmatpush1.msra.mxu0 0.0
    %109 = vmatprep.subr.mxu0 0.0
    %110 = vmatpush1.msra.mxu0 0.0
    %111 = vmatprep.subr.mxu0 %v42
    %112 = vmatpush1.msra.mxu0 %v41
    %113 = vmatprep.subr.mxu0 %v40
    %114 = vmatpush1.msra.mxu0 %v39
    %115 = vmatprep.subr.mxu0 0.0
    %116 = vmatpush2.msra.mxu0 0.0
    %117 = vmatprep.subr.mxu0 0.0
    %118 = vmatpush2.msra.mxu0 0.0
    %119 = vmatprep.subr.mxu0 0.0
    %120 = vmatpush2.msra.mxu0 0.0
    %121 = vmatprep.subr.mxu0 0.0
    %122 = vmatpush2.msra.mxu0 0.0
    %123 = vmatprep.subr.mxu0 0.0
    %124 = vmatpush2.msra.mxu0 0.0
    %125 = vmatprep.subr.mxu0 0.0
    %126 = vmatpush2.msra.mxu0 0.0
    %127 = vmatprep.subr.mxu0 0.0
    %128 = vmatpush2.msra.mxu0 0.0
    %129 = vmatprep.subr.mxu0 0.0
    %130 = vmatpush2.msra.mxu0 0.0
    %131 = vmatprep.subr.mxu0 0.0
    %132 = vmatpush2.msra.mxu0 0.0
    %133 = vmatprep.subr.mxu0 0.0
    %134 = vmatpush2.msra.mxu0 0.0
    %135 = vmatprep.subr.mxu0 0.0
    %136 = vmatpush2.msra.mxu0 0.0
    %137 = vmatprep.subr.mxu0 0.0
    %138 = vmatpush2.msra.mxu0 0.0
    %139 = vmatprep.subr.mxu0 0.0
    %140 = vmatpush2.msra.mxu0 0.0
    %141 = vmatprep.subr.mxu0 0.0
    %142 = vmatpush2.msra.mxu0 0.0
    %143 = vmatprep.subr.mxu0 0.0
    %144 = vmatpush2.msra.mxu0 0.0
    %145 = vmatprep.subr.mxu0 0.0
    %146 = vmatpush2.msra.mxu0 0.0
    %147 = vmatprep.mubr.f32.mxu0 0.0
    %148 = vmatmul.mubr.f32.gmra.mxu0 %v78
    %v149 = vpop.f32.mrf.mxu0
    %v150 = vadd.f32 %v69, %v149
    %v151 = vpop.f32.mrf.mxu0
    %v152 = vadd.f32 %v73, %v151
    %153 = vmatprep.mubr.f32.mxu0 0.0
    %154 = vmatmul.mubr.f32.gmra.mxu0 %v81
    %v155 = vpop.f32.mrf.mxu0
    %v156 = vadd.f32 %v69, %v155
    %v157 = vpop.f32.mrf.mxu0
    %v158 = vadd.f32 %v73, %v157
    %159 = vdwg.mxu0
    %v160 = vlaneseq
    %v161 = vand.u32 %v160, 127
    %v162 = vxor.u32 %v150, 2147483648
    %v163 = vxor.u32 %v152, 2147483648
    %v164 = vmul.f32 %v162, 1.442695
    %v165 = vpow.pop %v164
    %v166 = vmul.f32 %v163, 1.442695
    %v167 = vpow.pop %v166
    %v168 = vadd.f32 %v165, 1.0
    %v169 = vadd.f32 %v167, 1.0
    %v170 = vrcp.pop %v168
    %v171 = vmul.f32 1.0, %v170
    %v172 = vrcp.pop %v169
    %v173 = vmul.f32 1.0, %v172
    %v174 = vtanh.pop %v152
    %vm175 = vcmp.lt.s32.totalorder %v161, 32
    %v176 = vmul.f32 %v171, %v174
    %v177 = vsel %vm175, %v176, 0.0
    %v178 = vtanh.pop %v177
    %180 = vrot.lane.b32.xlu0 %v178, 64
    %v181 = vpop.permute.xlu0 %180
    %v183 = vmul.f32 %v173, %v181
    %185 = vrot.lane.b32.xlu0 %v183, 64
    %v186 = vpop.permute.xlu0 %185
    %vm187 = vcmask 523264
    %v188 = vsel %vm187, %v186, 0
    %190 = vmatprep.subr.mxu0 0.0
    %191 = vmatpush1.msra.mxu0 0.0
    %192 = vmatprep.subr.mxu0 0.0
    %193 = vmatpush1.msra.mxu0 0.0
    %194 = vmatprep.subr.mxu0 0.0
    %195 = vmatpush1.msra.mxu0 0.0
    %196 = vmatprep.subr.mxu0 0.0
    %197 = vmatpush1.msra.mxu0 0.0
    %198 = vmatprep.subr.mxu0 0.0
    %199 = vmatpush1.msra.mxu0 0.0
    %200 = vmatprep.subr.mxu0 0.0
    %201 = vmatpush1.msra.mxu0 0.0
    %202 = vmatprep.subr.mxu0 0.0
    %203 = vmatpush1.msra.mxu0 0.0
    %204 = vmatprep.subr.mxu0 0.0
    %205 = vmatpush1.msra.mxu0 0.0
    %206 = vmatprep.subr.mxu0 %v58
    %207 = vmatpush1.msra.mxu0 %v57
    %208 = vmatprep.subr.mxu0 %v56
    %209 = vmatpush1.msra.mxu0 %v55
    %210 = vmatprep.subr.mxu0 %v54
    %211 = vmatpush1.msra.mxu0 %v53
    %212 = vmatprep.subr.mxu0 %v52
    %213 = vmatpush1.msra.mxu0 %v51
    %214 = vmatprep.subr.mxu0 %v50
    %215 = vmatpush1.msra.mxu0 %v49
    %216 = vmatprep.subr.mxu0 %v48
    %217 = vmatpush1.msra.mxu0 %v47
    %218 = vmatprep.subr.mxu0 %v46
    %219 = vmatpush1.msra.mxu0 %v45
    %220 = vmatprep.subr.mxu0 %v44
    %221 = vmatpush1.msra.mxu0 %v43
    %222 = vmatprep.subr.mxu0 0.0
    %223 = vmatpush2.msra.mxu0 0.0
    %224 = vmatprep.subr.mxu0 0.0
    %225 = vmatpush2.msra.mxu0 0.0
    %226 = vmatprep.subr.mxu0 0.0
    %227 = vmatpush2.msra.mxu0 0.0
    %228 = vmatprep.subr.mxu0 0.0
    %229 = vmatpush2.msra.mxu0 0.0
    %230 = vmatprep.subr.mxu0 0.0
    %231 = vmatpush2.msra.mxu0 0.0
    %232 = vmatprep.subr.mxu0 0.0
    %233 = vmatpush2.msra.mxu0 0.0
    %234 = vmatprep.subr.mxu0 0.0
    %235 = vmatpush2.msra.mxu0 0.0
    %236 = vmatprep.subr.mxu0 0.0
    %237 = vmatpush2.msra.mxu0 0.0
    %238 = vmatprep.subr.mxu0 0.0
    %239 = vmatpush2.msra.mxu0 0.0
    %240 = vmatprep.subr.mxu0 0.0
    %241 = vmatpush2.msra.mxu0 0.0
    %242 = vmatprep.subr.mxu0 0.0
    %243 = vmatpush2.msra.mxu0 0.0
    %244 = vmatprep.subr.mxu0 0.0
    %245 = vmatpush2.msra.mxu0 0.0
    %246 = vmatprep.subr.mxu0 0.0
    %247 = vmatpush2.msra.mxu0 0.0
    %248 = vmatprep.subr.mxu0 0.0
    %249 = vmatpush2.msra.mxu0 0.0
    %250 = vmatprep.subr.mxu0 0.0
    %251 = vmatpush2.msra.mxu0 0.0
    %252 = vmatprep.subr.mxu0 0.0
    %253 = vmatpush2.msra.mxu0 0.0
    %254 = vmatprep.mubr.f32.mxu0 0.0
    %255 = vmatmul.mubr.f32.gmra.mxu0 %v188
    %v256 = vpop.f32.mrf.mxu0
    %v257 = vadd.f32 0.0, %v256
    %v258 = vpop.f32.mrf.mxu0
    %v259 = vadd.f32 0.0, %v258
    %260 = vdwg.mxu0
    %v263 = vrot.slane %v257, 6
    %v264 = vrot.slane %v259, 6
    %v267 = vadd.f32 %v150, %v263
    %v268 = vadd.f32 %v152, %v264
    %v269 = vxor.u32 %v267, 2147483648
    %v270 = vxor.u32 %v268, 2147483648
    %v271 = vmul.f32 %v269, 1.442695
    %v272 = vpow.pop %v271
    %v273 = vmul.f32 %v270, 1.442695
    %v274 = vpow.pop %v273
    %v275 = vadd.f32 %v272, 1.0
    %v276 = vadd.f32 %v274, 1.0
    %v277 = vrcp.pop %v275
    %v278 = vmul.f32 1.0, %v277
    %v279 = vrcp.pop %v276
    %v280 = vmul.f32 1.0, %v279
    %v281 = vtanh.pop %v268
    %v283 = vrot.slane %v177, 6
    %284 = vrot.lane.b32.xlu0 %v283, 64
    %v285 = vpop.permute.xlu0 %284
    %v287 = vmul.f32 %v278, %v285
    %v288 = vmul.f32 %v278, %v281
    %290 = vrot.lane.b32.xlu0 %v288, 64
    %v291 = vpop.permute.xlu0 %290
    %v293 = vadd.f32 %v287, %v291
    %v294 = vtanh.pop %v293
    %v295 = vmul.f32 %v280, %v294
    %v297 = vrot.slane %v295, 2
    %298 = vrot.lane.b32.xlu0 %v297, 64
    %v299 = vpop.permute.xlu0 %298
    %v300 = vsel %vm187, %v299, 0
    %302 = vmatprep.subr.mxu0 0.0
    %303 = vmatpush1.msra.mxu0 0.0
    %304 = vmatprep.subr.mxu0 0.0
    %305 = vmatpush1.msra.mxu0 0.0
    %306 = vmatprep.subr.mxu0 0.0
    %307 = vmatpush1.msra.mxu0 0.0
    %308 = vmatprep.subr.mxu0 0.0
    %309 = vmatpush1.msra.mxu0 0.0
    %310 = vmatprep.subr.mxu0 0.0
    %311 = vmatpush1.msra.mxu0 0.0
    %312 = vmatprep.subr.mxu0 0.0
    %313 = vmatpush1.msra.mxu0 0.0
    %314 = vmatprep.subr.mxu0 0.0
    %315 = vmatpush1.msra.mxu0 0.0
    %316 = vmatprep.subr.mxu0 0.0
    %317 = vmatpush1.msra.mxu0 0.0
    %318 = vmatprep.subr.mxu0 %v58
    %319 = vmatpush1.msra.mxu0 %v57
    %320 = vmatprep.subr.mxu0 %v56
    %321 = vmatpush1.msra.mxu0 %v55
    %322 = vmatprep.subr.mxu0 %v54
    %323 = vmatpush1.msra.mxu0 %v53
    %324 = vmatprep.subr.mxu0 %v52
    %325 = vmatpush1.msra.mxu0 %v51
    %326 = vmatprep.subr.mxu0 %v50
    %327 = vmatpush1.msra.mxu0 %v49
    %328 = vmatprep.subr.mxu0 %v48
    %329 = vmatpush1.msra.mxu0 %v47
    %330 = vmatprep.subr.mxu0 %v46
    %331 = vmatpush1.msra.mxu0 %v45
    %332 = vmatprep.subr.mxu0 %v44
    %333 = vmatpush1.msra.mxu0 %v43
    %334 = vmatprep.subr.mxu0 0.0
    %335 = vmatpush2.msra.mxu0 0.0
    %336 = vmatprep.subr.mxu0 0.0
    %337 = vmatpush2.msra.mxu0 0.0
    %338 = vmatprep.subr.mxu0 0.0
    %339 = vmatpush2.msra.mxu0 0.0
    %340 = vmatprep.subr.mxu0 0.0
    %341 = vmatpush2.msra.mxu0 0.0
    %342 = vmatprep.subr.mxu0 0.0
    %343 = vmatpush2.msra.mxu0 0.0
    %344 = vmatprep.subr.mxu0 0.0
    %345 = vmatpush2.msra.mxu0 0.0
    %346 = vmatprep.subr.mxu0 0.0
    %347 = vmatpush2.msra.mxu0 0.0
    %348 = vmatprep.subr.mxu0 0.0
    %349 = vmatpush2.msra.mxu0 0.0
    %350 = vmatprep.subr.mxu0 0.0
    %351 = vmatpush2.msra.mxu0 0.0
    %352 = vmatprep.subr.mxu0 0.0
    %353 = vmatpush2.msra.mxu0 0.0
    %354 = vmatprep.subr.mxu0 0.0
    %355 = vmatpush2.msra.mxu0 0.0
    %356 = vmatprep.subr.mxu0 0.0
    %357 = vmatpush2.msra.mxu0 0.0
    %358 = vmatprep.subr.mxu0 0.0
    %359 = vmatpush2.msra.mxu0 0.0
    %360 = vmatprep.subr.mxu0 0.0
    %361 = vmatpush2.msra.mxu0 0.0
    %362 = vmatprep.subr.mxu0 0.0
    %363 = vmatpush2.msra.mxu0 0.0
    %364 = vmatprep.subr.mxu0 0.0
    %365 = vmatpush2.msra.mxu0 0.0
    %366 = vmatprep.mubr.f32.mxu0 0.0
    %367 = vmatmul.mubr.f32.gmra.mxu0 %v300
    %v368 = vpop.f32.mrf.mxu0
    %v369 = vadd.f32 0.0, %v368
    %v370 = vpop.f32.mrf.mxu0
    %v371 = vadd.f32 0.0, %v370
    %372 = vdwg.mxu0
    %v375 = vrot.slane %v369, 4
    %v376 = vrot.slane %v371, 4
    %v379 = vadd.f32 %v150, %v375
    %v380 = vadd.f32 %v152, %v376
    %v381 = vxor.u32 %v379, 2147483648
    %v382 = vxor.u32 %v380, 2147483648
    %v383 = vmul.f32 %v381, 1.442695
    %v384 = vpow.pop %v383
    %v385 = vmul.f32 %v382, 1.442695
    %v386 = vpow.pop %v385
    %v387 = vadd.f32 %v384, 1.0
    %v388 = vadd.f32 %v386, 1.0
    %v389 = vrcp.pop %v387
    %v390 = vmul.f32 1.0, %v389
    %v391 = vrcp.pop %v388
    %v392 = vmul.f32 1.0, %v391
    %v393 = vtanh.pop %v380
    %v395 = vrot.slane %v293, 6
    %v397 = vmul.f32 %v390, %v395
    %v398 = vmul.f32 %v390, %v393
    %400 = vrot.lane.b32.xlu0 %v398, 64
    %v401 = vpop.permute.xlu0 %400
    %v403 = vadd.f32 %v397, %v401
    %v404 = vtanh.pop %v403
    %v405 = vmul.f32 %v392, %v404
    %v407 = vrot.slane %v405, 4
    %408 = vrot.lane.b32.xlu0 %v407, 64
    %v409 = vpop.permute.xlu0 %408
    %v410 = vsel %vm187, %v409, 0
    %412 = vmatprep.subr.mxu0 0.0
    %413 = vmatpush1.msra.mxu0 0.0
    %414 = vmatprep.subr.mxu0 0.0
    %415 = vmatpush1.msra.mxu0 0.0
    %416 = vmatprep.subr.mxu0 0.0
    %417 = vmatpush1.msra.mxu0 0.0
    %418 = vmatprep.subr.mxu0 0.0
    %419 = vmatpush1.msra.mxu0 0.0
    %420 = vmatprep.subr.mxu0 0.0
    %421 = vmatpush1.msra.mxu0 0.0
    %422 = vmatprep.subr.mxu0 0.0
    %423 = vmatpush1.msra.mxu0 0.0
    %424 = vmatprep.subr.mxu0 0.0
    %425 = vmatpush1.msra.mxu0 0.0
    %426 = vmatprep.subr.mxu0 0.0
    %427 = vmatpush1.msra.mxu0 0.0
    %428 = vmatprep.subr.mxu0 %v58
    %429 = vmatpush1.msra.mxu0 %v57
    %430 = vmatprep.subr.mxu0 %v56
    %431 = vmatpush1.msra.mxu0 %v55
    %432 = vmatprep.subr.mxu0 %v54
    %433 = vmatpush1.msra.mxu0 %v53
    %434 = vmatprep.subr.mxu0 %v52
    %435 = vmatpush1.msra.mxu0 %v51
    %436 = vmatprep.subr.mxu0 %v50
    %437 = vmatpush1.msra.mxu0 %v49
    %438 = vmatprep.subr.mxu0 %v48
    %439 = vmatpush1.msra.mxu0 %v47
    %440 = vmatprep.subr.mxu0 %v46
    %441 = vmatpush1.msra.mxu0 %v45
    %442 = vmatprep.subr.mxu0 %v44
    %443 = vmatpush1.msra.mxu0 %v43
    %444 = vmatprep.subr.mxu0 0.0
    %445 = vmatpush2.msra.mxu0 0.0
    %446 = vmatprep.subr.mxu0 0.0
    %447 = vmatpush2.msra.mxu0 0.0
    %448 = vmatprep.subr.mxu0 0.0
    %449 = vmatpush2.msra.mxu0 0.0
    %450 = vmatprep.subr.mxu0 0.0
    %451 = vmatpush2.msra.mxu0 0.0
    %452 = vmatprep.subr.mxu0 0.0
    %453 = vmatpush2.msra.mxu0 0.0
    %454 = vmatprep.subr.mxu0 0.0
    %455 = vmatpush2.msra.mxu0 0.0
    %456 = vmatprep.subr.mxu0 0.0
    %457 = vmatpush2.msra.mxu0 0.0
    %458 = vmatprep.subr.mxu0 0.0
    %459 = vmatpush2.msra.mxu0 0.0
    %460 = vmatprep.subr.mxu0 0.0
    %461 = vmatpush2.msra.mxu0 0.0
    %462 = vmatprep.subr.mxu0 0.0
    %463 = vmatpush2.msra.mxu0 0.0
    %464 = vmatprep.subr.mxu0 0.0
    %465 = vmatpush2.msra.mxu0 0.0
    %466 = vmatprep.subr.mxu0 0.0
    %467 = vmatpush2.msra.mxu0 0.0
    %468 = vmatprep.subr.mxu0 0.0
    %469 = vmatpush2.msra.mxu0 0.0
    %470 = vmatprep.subr.mxu0 0.0
    %471 = vmatpush2.msra.mxu0 0.0
    %472 = vmatprep.subr.mxu0 0.0
    %473 = vmatpush2.msra.mxu0 0.0
    %474 = vmatprep.subr.mxu0 0.0
    %475 = vmatpush2.msra.mxu0 0.0
    %476 = vmatprep.mubr.f32.mxu0 0.0
    %477 = vmatmul.mubr.f32.gmra.mxu0 %v410
    %v478 = vpop.f32.mrf.mxu0
    %v479 = vadd.f32 0.0, %v478
    %v480 = vpop.f32.mrf.mxu0
    %v481 = vadd.f32 0.0, %v480
    %482 = vdwg.mxu0
    %v485 = vrot.slane %v479, 2
    %v486 = vrot.slane %v481, 2
    %v489 = vadd.f32 %v150, %v485
    %v490 = vadd.f32 %v152, %v486
    %v491 = vxor.u32 %v489, 2147483648
    %v492 = vxor.u32 %v490, 2147483648
    %v493 = vmul.f32 %v491, 1.442695
    %v494 = vpow.pop %v493
    %v495 = vmul.f32 %v492, 1.442695
    %v496 = vpow.pop %v495
    %v497 = vadd.f32 %v494, 1.0
    %v498 = vadd.f32 %v496, 1.0
    %v499 = vrcp.pop %v497
    %v500 = vmul.f32 1.0, %v499
    %v501 = vrcp.pop %v498
    %v502 = vmul.f32 1.0, %v501
    %v503 = vtanh.pop %v490
    %v505 = vrot.slane %v403, 6
    %v507 = vmul.f32 %v500, %v505
    %v508 = vmul.f32 %v500, %v503
    %510 = vrot.lane.b32.xlu0 %v508, 64
    %v511 = vpop.permute.xlu0 %510
    %v513 = vadd.f32 %v507, %v511
    %v514 = vtanh.pop %v513
    %v515 = vmul.f32 %v502, %v514
    %v517 = vrot.slane %v515, 6
    %518 = vrot.lane.b32.xlu0 %v517, 64
    %v519 = vpop.permute.xlu0 %518
    %v520 = vsel %vm187, %v519, 0
    %522 = vmatprep.subr.mxu0 0.0
    %523 = vmatpush1.msra.mxu0 0.0
    %524 = vmatprep.subr.mxu0 0.0
    %525 = vmatpush1.msra.mxu0 0.0
    %526 = vmatprep.subr.mxu0 0.0
    %527 = vmatpush1.msra.mxu0 0.0
    %528 = vmatprep.subr.mxu0 0.0
    %529 = vmatpush1.msra.mxu0 0.0
    %530 = vmatprep.subr.mxu0 0.0
    %531 = vmatpush1.msra.mxu0 0.0
    %532 = vmatprep.subr.mxu0 0.0
    %533 = vmatpush1.msra.mxu0 0.0
    %534 = vmatprep.subr.mxu0 0.0
    %535 = vmatpush1.msra.mxu0 0.0
    %536 = vmatprep.subr.mxu0 0.0
    %537 = vmatpush1.msra.mxu0 0.0
    %538 = vmatprep.subr.mxu0 %v58
    %539 = vmatpush1.msra.mxu0 %v57
    %540 = vmatprep.subr.mxu0 %v56
    %541 = vmatpush1.msra.mxu0 %v55
    %542 = vmatprep.subr.mxu0 %v54
    %543 = vmatpush1.msra.mxu0 %v53
    %544 = vmatprep.subr.mxu0 %v52
    %545 = vmatpush1.msra.mxu0 %v51
    %546 = vmatprep.subr.mxu0 %v50
    %547 = vmatpush1.msra.mxu0 %v49
    %548 = vmatprep.subr.mxu0 %v48
    %549 = vmatpush1.msra.mxu0 %v47
    %550 = vmatprep.subr.mxu0 %v46
    %551 = vmatpush1.msra.mxu0 %v45
    %552 = vmatprep.subr.mxu0 %v44
    %553 = vmatpush1.msra.mxu0 %v43
    %554 = vmatprep.subr.mxu0 0.0
    %555 = vmatpush2.msra.mxu0 0.0
    %556 = vmatprep.subr.mxu0 0.0
    %557 = vmatpush2.msra.mxu0 0.0
    %558 = vmatprep.subr.mxu0 0.0
    %559 = vmatpush2.msra.mxu0 0.0
    %560 = vmatprep.subr.mxu0 0.0
    %561 = vmatpush2.msra.mxu0 0.0
    %562 = vmatprep.subr.mxu0 0.0
    %563 = vmatpush2.msra.mxu0 0.0
    %564 = vmatprep.subr.mxu0 0.0
    %565 = vmatpush2.msra.mxu0 0.0
    %566 = vmatprep.subr.mxu0 0.0
    %567 = vmatpush2.msra.mxu0 0.0
    %568 = vmatprep.subr.mxu0 0.0
    %569 = vmatpush2.msra.mxu0 0.0
    %570 = vmatprep.subr.mxu0 0.0
    %571 = vmatpush2.msra.mxu0 0.0
    %572 = vmatprep.subr.mxu0 0.0
    %573 = vmatpush2.msra.mxu0 0.0
    %574 = vmatprep.subr.mxu0 0.0
    %575 = vmatpush2.msra.mxu0 0.0
    %576 = vmatprep.subr.mxu0 0.0
    %577 = vmatpush2.msra.mxu0 0.0
    %578 = vmatprep.subr.mxu0 0.0
    %579 = vmatpush2.msra.mxu0 0.0
    %580 = vmatprep.subr.mxu0 0.0
    %581 = vmatpush2.msra.mxu0 0.0
    %582 = vmatprep.subr.mxu0 0.0
    %583 = vmatpush2.msra.mxu0 0.0
    %584 = vmatprep.subr.mxu0 0.0
    %585 = vmatpush2.msra.mxu0 0.0
    %586 = vmatprep.mubr.f32.mxu0 0.0
    %587 = vmatmul.mubr.f32.gmra.mxu0 %v520
    %v588 = vpop.f32.mrf.mxu0
    %v589 = vadd.f32 0.0, %v588
    %v590 = vpop.f32.mrf.mxu0
    %v591 = vadd.f32 0.0, %v590
    %592 = vdwg.mxu0
    %v593 = vadd.f32 %v156, %v589
    %v594 = vadd.f32 %v158, %v591
    %v595 = vxor.u32 %v593, 2147483648
    %v596 = vxor.u32 %v594, 2147483648
    %v597 = vmul.f32 %v595, 1.442695
    %v598 = vpow.pop %v597
    %v599 = vmul.f32 %v596, 1.442695
    %v600 = vpow.pop %v599
    %v601 = vadd.f32 %v598, 1.0
    %v602 = vadd.f32 %v600, 1.0
    %v603 = vrcp.pop %v601
    %v604 = vmul.f32 1.0, %v603
    %v605 = vrcp.pop %v602
    %v606 = vmul.f32 1.0, %v605
    %v607 = vtanh.pop %v594
    %v609 = vrot.slane %v513, 6
    %v611 = vmul.f32 %v604, %v609
    %v612 = vmul.f32 %v604, %v607
    %614 = vrot.lane.b32.xlu0 %v612, 64
    %v615 = vpop.permute.xlu0 %614
    %v617 = vadd.f32 %v611, %v615
    %v618 = vtanh.pop %v617
    %v619 = vmul.f32 %v606, %v618
    %621 = vrot.lane.b32.xlu0 %v619, 64
    %v622 = vpop.permute.xlu0 %621
    %v623 = vsel %vm187, %v622, 0
    %625 = vmatprep.subr.mxu0 0.0
    %626 = vmatpush1.msra.mxu0 0.0
    %627 = vmatprep.subr.mxu0 0.0
    %628 = vmatpush1.msra.mxu0 0.0
    %629 = vmatprep.subr.mxu0 0.0
    %630 = vmatpush1.msra.mxu0 0.0
    %631 = vmatprep.subr.mxu0 0.0
    %632 = vmatpush1.msra.mxu0 0.0
    %633 = vmatprep.subr.mxu0 0.0
    %634 = vmatpush1.msra.mxu0 0.0
    %635 = vmatprep.subr.mxu0 0.0
    %636 = vmatpush1.msra.mxu0 0.0
    %637 = vmatprep.subr.mxu0 0.0
    %638 = vmatpush1.msra.mxu0 0.0
    %639 = vmatprep.subr.mxu0 0.0
    %640 = vmatpush1.msra.mxu0 0.0
    %641 = vmatprep.subr.mxu0 %v58
    %642 = vmatpush1.msra.mxu0 %v57
    %643 = vmatprep.subr.mxu0 %v56
    %644 = vmatpush1.msra.mxu0 %v55
    %645 = vmatprep.subr.mxu0 %v54
    %646 = vmatpush1.msra.mxu0 %v53
    %647 = vmatprep.subr.mxu0 %v52
    %648 = vmatpush1.msra.mxu0 %v51
    %649 = vmatprep.subr.mxu0 %v50
    %650 = vmatpush1.msra.mxu0 %v49
    %651 = vmatprep.subr.mxu0 %v48
    %652 = vmatpush1.msra.mxu0 %v47
    %653 = vmatprep.subr.mxu0 %v46
    %654 = vmatpush1.msra.mxu0 %v45
    %655 = vmatprep.subr.mxu0 %v44
    %656 = vmatpush1.msra.mxu0 %v43
    %657 = vmatprep.subr.mxu0 0.0
    %658 = vmatpush2.msra.mxu0 0.0
    %659 = vmatprep.subr.mxu0 0.0
    %660 = vmatpush2.msra.mxu0 0.0
    %661 = vmatprep.subr.mxu0 0.0
    %662 = vmatpush2.msra.mxu0 0.0
    %663 = vmatprep.subr.mxu0 0.0
    %664 = vmatpush2.msra.mxu0 0.0
    %665 = vmatprep.subr.mxu0 0.0
    %666 = vmatpush2.msra.mxu0 0.0
    %667 = vmatprep.subr.mxu0 0.0
    %668 = vmatpush2.msra.mxu0 0.0
    %669 = vmatprep.subr.mxu0 0.0
    %670 = vmatpush2.msra.mxu0 0.0
    %671 = vmatprep.subr.mxu0 0.0
    %672 = vmatpush2.msra.mxu0 0.0
    %673 = vmatprep.subr.mxu0 0.0
    %674 = vmatpush2.msra.mxu0 0.0
    %675 = vmatprep.subr.mxu0 0.0
    %676 = vmatpush2.msra.mxu0 0.0
    %677 = vmatprep.subr.mxu0 0.0
    %678 = vmatpush2.msra.mxu0 0.0
    %679 = vmatprep.subr.mxu0 0.0
    %680 = vmatpush2.msra.mxu0 0.0
    %681 = vmatprep.subr.mxu0 0.0
    %682 = vmatpush2.msra.mxu0 0.0
    %683 = vmatprep.subr.mxu0 0.0
    %684 = vmatpush2.msra.mxu0 0.0
    %685 = vmatprep.subr.mxu0 0.0
    %686 = vmatpush2.msra.mxu0 0.0
    %687 = vmatprep.subr.mxu0 0.0
    %688 = vmatpush2.msra.mxu0 0.0
    %689 = vmatprep.mubr.f32.mxu0 0.0
    %690 = vmatmul.mubr.f32.gmra.mxu0 %v623
    %v691 = vpop.f32.mrf.mxu0
    %v692 = vadd.f32 0.0, %v691
    %v693 = vpop.f32.mrf.mxu0
    %v694 = vadd.f32 0.0, %v693
    %695 = vdwg.mxu0
    %v698 = vrot.slane %v692, 6
    %v699 = vrot.slane %v694, 6
    %v702 = vadd.f32 %v156, %v698
    %v703 = vadd.f32 %v158, %v699
    %v704 = vxor.u32 %v702, 2147483648
    %v705 = vxor.u32 %v703, 2147483648
    %v706 = vmul.f32 %v704, 1.442695
    %v707 = vpow.pop %v706
    %v708 = vmul.f32 %v705, 1.442695
    %v709 = vpow.pop %v708
    %v710 = vadd.f32 %v707, 1.0
    %v711 = vadd.f32 %v709, 1.0
    %v712 = vrcp.pop %v710
    %v713 = vmul.f32 1.0, %v712
    %v714 = vrcp.pop %v711
    %v715 = vmul.f32 1.0, %v714
    %v716 = vtanh.pop %v703
    %v718 = vrot.slane %v617, 6
    %v720 = vmul.f32 %v713, %v718
    %v721 = vmul.f32 %v713, %v716
    %723 = vrot.lane.b32.xlu0 %v721, 64
    %v724 = vpop.permute.xlu0 %723
    %v726 = vadd.f32 %v720, %v724
    %v727 = vtanh.pop %v726
    %v728 = vmul.f32 %v715, %v727
    %v730 = vrot.slane %v728, 2
    %731 = vrot.lane.b32.xlu0 %v730, 64
    %v732 = vpop.permute.xlu0 %731
    %v733 = vsel %vm187, %v732, 0
    %735 = vmatprep.subr.mxu0 0.0
    %736 = vmatpush1.msra.mxu0 0.0
    %737 = vmatprep.subr.mxu0 0.0
    %738 = vmatpush1.msra.mxu0 0.0
    %739 = vmatprep.subr.mxu0 0.0
    %740 = vmatpush1.msra.mxu0 0.0
    %741 = vmatprep.subr.mxu0 0.0
    %742 = vmatpush1.msra.mxu0 0.0
    %743 = vmatprep.subr.mxu0 0.0
    %744 = vmatpush1.msra.mxu0 0.0
    %745 = vmatprep.subr.mxu0 0.0
    %746 = vmatpush1.msra.mxu0 0.0
    %747 = vmatprep.subr.mxu0 0.0
    %748 = vmatpush1.msra.mxu0 0.0
    %749 = vmatprep.subr.mxu0 0.0
    %750 = vmatpush1.msra.mxu0 0.0
    %751 = vmatprep.subr.mxu0 %v58
    %752 = vmatpush1.msra.mxu0 %v57
    %753 = vmatprep.subr.mxu0 %v56
    %754 = vmatpush1.msra.mxu0 %v55
    %755 = vmatprep.subr.mxu0 %v54
    %756 = vmatpush1.msra.mxu0 %v53
    %757 = vmatprep.subr.mxu0 %v52
    %758 = vmatpush1.msra.mxu0 %v51
    %759 = vmatprep.subr.mxu0 %v50
    %760 = vmatpush1.msra.mxu0 %v49
    %761 = vmatprep.subr.mxu0 %v48
    %762 = vmatpush1.msra.mxu0 %v47
    %763 = vmatprep.subr.mxu0 %v46
    %764 = vmatpush1.msra.mxu0 %v45
    %765 = vmatprep.subr.mxu0 %v44
    %766 = vmatpush1.msra.mxu0 %v43
    %767 = vmatprep.subr.mxu0 0.0
    %768 = vmatpush2.msra.mxu0 0.0
    %769 = vmatprep.subr.mxu0 0.0
    %770 = vmatpush2.msra.mxu0 0.0
    %771 = vmatprep.subr.mxu0 0.0
    %772 = vmatpush2.msra.mxu0 0.0
    %773 = vmatprep.subr.mxu0 0.0
    %774 = vmatpush2.msra.mxu0 0.0
    %775 = vmatprep.subr.mxu0 0.0
    %776 = vmatpush2.msra.mxu0 0.0
    %777 = vmatprep.subr.mxu0 0.0
    %778 = vmatpush2.msra.mxu0 0.0
    %779 = vmatprep.subr.mxu0 0.0
    %780 = vmatpush2.msra.mxu0 0.0
    %781 = vmatprep.subr.mxu0 0.0
    %782 = vmatpush2.msra.mxu0 0.0
    %783 = vmatprep.subr.mxu0 0.0
    %784 = vmatpush2.msra.mxu0 0.0
    %785 = vmatprep.subr.mxu0 0.0
    %786 = vmatpush2.msra.mxu0 0.0
    %787 = vmatprep.subr.mxu0 0.0
    %788 = vmatpush2.msra.mxu0 0.0
    %789 = vmatprep.subr.mxu0 0.0
    %790 = vmatpush2.msra.mxu0 0.0
    %791 = vmatprep.subr.mxu0 0.0
    %792 = vmatpush2.msra.mxu0 0.0
    %793 = vmatprep.subr.mxu0 0.0
    %794 = vmatpush2.msra.mxu0 0.0
    %795 = vmatprep.subr.mxu0 0.0
    %796 = vmatpush2.msra.mxu0 0.0
    %797 = vmatprep.subr.mxu0 0.0
    %798 = vmatpush2.msra.mxu0 0.0
    %799 = vmatprep.mubr.f32.mxu0 0.0
    %800 = vmatmul.mubr.f32.gmra.mxu0 %v733
    %v801 = vpop.f32.mrf.mxu0
    %v802 = vadd.f32 0.0, %v801
    %v803 = vpop.f32.mrf.mxu0
    %v804 = vadd.f32 0.0, %v803
    %805 = vdwg.mxu0
    %v808 = vrot.slane %v802, 4
    %v809 = vrot.slane %v804, 4
    %v812 = vadd.f32 %v156, %v808
    %v813 = vadd.f32 %v158, %v809
    %v814 = vxor.u32 %v812, 2147483648
    %v815 = vxor.u32 %v813, 2147483648
    %v816 = vmul.f32 %v814, 1.442695
    %v817 = vpow.pop %v816
    %v818 = vmul.f32 %v815, 1.442695
    %v819 = vpow.pop %v818
    %v820 = vadd.f32 %v817, 1.0
    %v821 = vadd.f32 %v819, 1.0
    %v822 = vrcp.pop %v820
    %v823 = vmul.f32 1.0, %v822
    %v824 = vrcp.pop %v821
    %v825 = vmul.f32 1.0, %v824
    %v826 = vtanh.pop %v813
    %v828 = vrot.slane %v726, 6
    %v830 = vmul.f32 %v823, %v828
    %v831 = vmul.f32 %v823, %v826
    %833 = vrot.lane.b32.xlu0 %v831, 64
    %v834 = vpop.permute.xlu0 %833
    %v836 = vadd.f32 %v830, %v834
    %v837 = vtanh.pop %v836
    %v838 = vmul.f32 %v825, %v837
    %v840 = vrot.slane %v838, 4
    %841 = vrot.lane.b32.xlu0 %v840, 64
    %v842 = vpop.permute.xlu0 %841
    %v843 = vsel %vm187, %v842, 0
    %845 = vmatprep.subr.mxu0 0.0
    %846 = vmatpush1.msra.mxu0 0.0
    %847 = vmatprep.subr.mxu0 0.0
    %848 = vmatpush1.msra.mxu0 0.0
    %849 = vmatprep.subr.mxu0 0.0
    %850 = vmatpush1.msra.mxu0 0.0
    %851 = vmatprep.subr.mxu0 0.0
    %852 = vmatpush1.msra.mxu0 0.0
    %853 = vmatprep.subr.mxu0 0.0
    %854 = vmatpush1.msra.mxu0 0.0
    %855 = vmatprep.subr.mxu0 0.0
    %856 = vmatpush1.msra.mxu0 0.0
    %857 = vmatprep.subr.mxu0 0.0
    %858 = vmatpush1.msra.mxu0 0.0
    %859 = vmatprep.subr.mxu0 0.0
    %860 = vmatpush1.msra.mxu0 0.0
    %861 = vmatprep.subr.mxu0 %v58
    %862 = vmatpush1.msra.mxu0 %v57
    %863 = vmatprep.subr.mxu0 %v56
    %864 = vmatpush1.msra.mxu0 %v55
    %865 = vmatprep.subr.mxu0 %v54
    %866 = vmatpush1.msra.mxu0 %v53
    %867 = vmatprep.subr.mxu0 %v52
    %868 = vmatpush1.msra.mxu0 %v51
    %869 = vmatprep.subr.mxu0 %v50
    %870 = vmatpush1.msra.mxu0 %v49
    %871 = vmatprep.subr.mxu0 %v48
    %872 = vmatpush1.msra.mxu0 %v47
    %873 = vmatprep.subr.mxu0 %v46
    %874 = vmatpush1.msra.mxu0 %v45
    %875 = vmatprep.subr.mxu0 %v44
    %876 = vmatpush1.msra.mxu0 %v43
    %877 = vmatprep.subr.mxu0 0.0
    %878 = vmatpush2.msra.mxu0 0.0
    %879 = vmatprep.subr.mxu0 0.0
    %880 = vmatpush2.msra.mxu0 0.0
    %881 = vmatprep.subr.mxu0 0.0
    %882 = vmatpush2.msra.mxu0 0.0
    %883 = vmatprep.subr.mxu0 0.0
    %884 = vmatpush2.msra.mxu0 0.0
    %885 = vmatprep.subr.mxu0 0.0
    %886 = vmatpush2.msra.mxu0 0.0
    %887 = vmatprep.subr.mxu0 0.0
    %888 = vmatpush2.msra.mxu0 0.0
    %889 = vmatprep.subr.mxu0 0.0
    %890 = vmatpush2.msra.mxu0 0.0
    %891 = vmatprep.subr.mxu0 0.0
    %892 = vmatpush2.msra.mxu0 0.0
    %893 = vmatprep.subr.mxu0 0.0
    %894 = vmatpush2.msra.mxu0 0.0
    %895 = vmatprep.subr.mxu0 0.0
    %896 = vmatpush2.msra.mxu0 0.0
    %897 = vmatprep.subr.mxu0 0.0
    %898 = vmatpush2.msra.mxu0 0.0
    %899 = vmatprep.subr.mxu0 0.0
    %900 = vmatpush2.msra.mxu0 0.0
    %901 = vmatprep.subr.mxu0 0.0
    %902 = vmatpush2.msra.mxu0 0.0
    %903 = vmatprep.subr.mxu0 0.0
    %904 = vmatpush2.msra.mxu0 0.0
    %905 = vmatprep.subr.mxu0 0.0
    %906 = vmatpush2.msra.mxu0 0.0
    %907 = vmatprep.subr.mxu0 0.0
    %908 = vmatpush2.msra.mxu0 0.0
    %909 = vmatprep.mubr.f32.mxu0 0.0
    %910 = vmatmul.mubr.f32.gmra.mxu0 %v843
    %v911 = vpop.f32.mrf.mxu0
    %v912 = vadd.f32 0.0, %v911
    %v913 = vpop.f32.mrf.mxu0
    %v914 = vadd.f32 0.0, %v913
    %915 = vdwg.mxu0
    %v918 = vrot.slane %v912, 2
    %v919 = vrot.slane %v914, 2
    %v922 = vadd.f32 %v156, %v918
    %v923 = vadd.f32 %v158, %v919
    %v924 = vxor.u32 %v922, 2147483648
    %v925 = vxor.u32 %v923, 2147483648
    %v926 = vmul.f32 %v924, 1.442695
    %v927 = vpow.pop %v926
    %v928 = vmul.f32 %v925, 1.442695
    %v929 = vpow.pop %v928
    %v930 = vadd.f32 %v927, 1.0
    %v931 = vadd.f32 %v929, 1.0
    %v932 = vrcp.pop %v930
    %v933 = vmul.f32 1.0, %v932
    %v934 = vrcp.pop %v931
    %v935 = vmul.f32 1.0, %v934
    %v936 = vtanh.pop %v923
    %v938 = vrot.slane %v836, 6
    %v940 = vmul.f32 %v933, %v938
    %v941 = vmul.f32 %v933, %v936
    %943 = vrot.lane.b32.xlu0 %v941, 64
    %v944 = vpop.permute.xlu0 %943
    %v946 = vadd.f32 %v940, %v944
    %v947 = vtanh.pop %v946
    %v948 = vmul.f32 %v935, %v947
    %v950 = vrot.slane %v948, 6
    %951 = vrot.lane.b32.xlu0 %v950, 64
    %v952 = vpop.permute.xlu0 %951
    %v953 = vsel %vm187, %v952, 0
    %955 = vmatprep.subr.mxu0 0.0
    %956 = vmatpush1.msra.mxu0 0.0
    %957 = vmatprep.subr.mxu0 0.0
    %958 = vmatpush1.msra.mxu0 0.0
    %959 = vmatprep.subr.mxu0 0.0
    %960 = vmatpush1.msra.mxu0 0.0
    %961 = vmatprep.subr.mxu0 0.0
    %962 = vmatpush1.msra.mxu0 0.0
    %963 = vmatprep.subr.mxu0 0.0
    %964 = vmatpush1.msra.mxu0 0.0
    %965 = vmatprep.subr.mxu0 0.0
    %966 = vmatpush1.msra.mxu0 0.0
    %967 = vmatprep.subr.mxu0 0.0
    %968 = vmatpush1.msra.mxu0 0.0
    %969 = vmatprep.subr.mxu0 0.0
    %970 = vmatpush1.msra.mxu0 0.0
    %971 = vmatprep.subr.mxu0 %v58
    %972 = vmatpush1.msra.mxu0 %v57
    %973 = vmatprep.subr.mxu0 %v56
    %974 = vmatpush1.msra.mxu0 %v55
    %975 = vmatprep.subr.mxu0 %v54
    %976 = vmatpush1.msra.mxu0 %v53
    %977 = vmatprep.subr.mxu0 %v52
    %978 = vmatpush1.msra.mxu0 %v51
    %979 = vmatprep.subr.mxu0 %v50
    %980 = vmatpush1.msra.mxu0 %v49
    %981 = vmatprep.subr.mxu0 %v48
    %982 = vmatpush1.msra.mxu0 %v47
    %983 = vmatprep.subr.mxu0 %v46
    %984 = vmatpush1.msra.mxu0 %v45
    %985 = vmatprep.subr.mxu0 %v44
    %986 = vmatpush1.msra.mxu0 %v43
    %987 = vmatprep.subr.mxu0 0.0
    %988 = vmatpush2.msra.mxu0 0.0
    %989 = vmatprep.subr.mxu0 0.0
    %990 = vmatpush2.msra.mxu0 0.0
    %991 = vmatprep.subr.mxu0 0.0
    %992 = vmatpush2.msra.mxu0 0.0
    %993 = vmatprep.subr.mxu0 0.0
    %994 = vmatpush2.msra.mxu0 0.0
    %995 = vmatprep.subr.mxu0 0.0
    %996 = vmatpush2.msra.mxu0 0.0
    %997 = vmatprep.subr.mxu0 0.0
    %998 = vmatpush2.msra.mxu0 0.0
    %999 = vmatprep.subr.mxu0 0.0
    %1000 = vmatpush2.msra.mxu0 0.0
    %1001 = vmatprep.subr.mxu0 0.0
    %1002 = vmatpush2.msra.mxu0 0.0
    %1003 = vmatprep.subr.mxu0 0.0
    %1004 = vmatpush2.msra.mxu0 0.0
    %1005 = vmatprep.subr.mxu0 0.0
    %1006 = vmatpush2.msra.mxu0 0.0
    %1007 = vmatprep.subr.mxu0 0.0
    %1008 = vmatpush2.msra.mxu0 0.0
    %1009 = vmatprep.subr.mxu0 0.0
    %1010 = vmatpush2.msra.mxu0 0.0
    %1011 = vmatprep.subr.mxu0 0.0
    %1012 = vmatpush2.msra.mxu0 0.0
    %1013 = vmatprep.subr.mxu0 0.0
    %1014 = vmatpush2.msra.mxu0 0.0
    %1015 = vmatprep.subr.mxu0 0.0
    %1016 = vmatpush2.msra.mxu0 0.0
    %1017 = vmatprep.subr.mxu0 0.0
    %1018 = vmatpush2.msra.mxu0 0.0
    %1019 = vmatprep.mubr.f32.mxu0 0.0
    %1020 = vmatmul.mubr.f32.gmra.mxu0 %v953
    %v1021 = vpop.f32.mrf.mxu0
    %v1022 = vadd.f32 %v69, %v1021
    %v1023 = vpop.f32.mrf.mxu0
    %v1024 = vadd.f32 %v73, %v1023
    %1025 = vdwg.mxu0
    %v1026 = vxor.u32 %v1022, 2147483648
    %v1027 = vxor.u32 %v1024, 2147483648
    %v1028 = vmul.f32 %v1026, 1.442695
    %v1029 = vpow.pop %v1028
    %v1030 = vmul.f32 %v1027, 1.442695
    %v1031 = vpow.pop %v1030
    %v1032 = vadd.f32 %v1029, 1.0
    %v1033 = vadd.f32 %v1031, 1.0
    %v1034 = vrcp.pop %v1032
    %v1035 = vmul.f32 1.0, %v1034
    %v1036 = vrcp.pop %v1033
    %v1037 = vmul.f32 1.0, %v1036
    %v1038 = vtanh.pop %v1024
    %v1040 = vrot.slane %v946, 6
    %v1042 = vmul.f32 %v1035, %v1040
    %v1043 = vmul.f32 %v1035, %v1038
    %1045 = vrot.lane.b32.xlu0 %v1043, 64
    %v1046 = vpop.permute.xlu0 %1045
    %v1048 = vadd.f32 %v1042, %v1046
    %v1049 = vtanh.pop %v1048
    %v1050 = vmul.f32 %v1037, %v1049
    %v1052 = vlaneseq
    %v1053 = vshrl.u32 %v1052, 7
    %v1054 = vsub.s32 0, %v1053
    %v1055 = vrot.slane %v62, %v1054
    %1056 = vrot.lane.b32.xlu0 %v1055, 96
    %v1057 = vpop.permute.xlu0 %1056
    %v1059 = vmul.f32 %v1050, %v1057
    %1061 = vrot.lane.b32.xlu0 %v1059, 32
    %v1062 = vpop.permute.xlu0 %1061
    %vm1064 = vcmask 254976
    %v1065 = vsel %vm1064, %v1062, 0.0
    %1066 = vadd.xlane.f32.xlu0 %v1065
    %v1067 = vpop.xlane.xlu0 %1066
    %v1069 = vadd.f32 %v1067, %v1055
    %v1070 = vxor.u32 %v1069, 2147483648
    %v1071 = vmul.f32 %v1070, 1.442695
    %v1072 = vpow.pop %v1071
    %v1073 = vadd.f32 %v1072, 1.0
    %v1074 = vrcp.pop %v1073
    %v1075 = vmul.f32 1.0, %v1074
    %1077 = vrot.lane.b32.xlu0 %v1075, 96
    %v1078 = vpop.permute.xlu0 %1077
    %vm1080 = vcmask 1024
    %1081 = vst.msk [vmem:[%s2] sm:$0x3] %vm1080, %v1078
    // Predicated region
    $region18: #{tpu_custom_call.1} parent=1 // pred_check
      _
    $region19: #{tpu_custom_call.1} parent=1 // pred_check_branch
      %1083 = sbr.rel (0) target = $region21
    $region20: #{tpu_custom_call.1} parent=1 // pred_region
      _
    $region21: #{tpu_custom_call.1} parent=1 // pred_fallthru
      _
    // Predicated region
    $region22: #{tpu_custom_call.1} parent=1 // pred_check
      _
    $region23: #{tpu_custom_call.1} parent=1 // pred_check_branch
      %1085 = sbr.rel (0) target = $region25
    $region24: #{tpu_custom_call.1} parent=1 // pred_region
      _
    $region25: #{tpu_custom_call.1} parent=1 // pred_fallthru
      _
    %1086 = vsyncpa [#allocation3], 1
    %1087 = vsyncpa [#allocation5], 1

</llo_original>
